<compile_context>
chip_gen: v7x
topology: tpu7x:2x2x1
jax: 0.10.0
libtpu: 0.0.40
codegen_flags: <defaults>
</compile_context>

<pallas_src>
import functools

import jax
import jax.numpy as jnp
from jax.experimental import pallas as pl
from jax.experimental.pallas import tpu as pltpu


def _cdiv(a, b):
    return -(-a // b)


def _cond_instnorm_kernel(x_ref, g_ref, ga_ref, b_ref, o_ref, *,
                          hw: int, in_eps: float, stat_eps: float):
    """One block = `bt` whole samples.

    x_ref : (bt, C, HW_pad) native dtype
    g_ref : (bt, 1, C) f32   gamma
    ga_ref: (bt, 1, C) f32   gamma * alpha
    b_ref : (bt, 1, C) f32   beta
    o_ref : (bt, C, HW_pad) native dtype
    """
    bt, c, hw_pad = x_ref.shape
    inv_hw = jnp.float32(1.0 / hw)

    # Pass 1: per-(sample, channel) spatial mean, accumulated in f32.
    s1 = jnp.sum(x_ref[...].astype(jnp.float32), axis=-1)            # (bt, C)
    mu = s1 * inv_hw

    # Pass 2: biased spatial variance, two-pass on the VMEM-resident block.
    # Padded (zero) lanes must be masked, since (0 - mu)^2 != 0.
    d = x_ref[...].astype(jnp.float32) - mu[:, :, None]
    if hw_pad != hw:
        lane = jax.lax.broadcasted_iota(jnp.int32, (bt, c, hw_pad), 2)
        d = jnp.where(lane < hw, d, 0.0)
    var = jnp.sum(d * d, axis=-1) * inv_hw                           # (bt, C)
    rstd = jax.lax.rsqrt(var + jnp.float32(in_eps))                  # (bt, C)

    # Cross-channel stats of the per-channel means (torch.var: unbiased).
    m = jnp.mean(mu, axis=1, keepdims=True)                          # (bt, 1)
    dm = mu - m
    # NOTE: c == 1 divides by zero, matching torch.var(unbiased) -> NaN.
    v = jnp.sum(dm * dm, axis=1, keepdims=True) / jnp.float32(c - 1)
    means_n = dm * jax.lax.rsqrt(v + jnp.float32(stat_eps))          # (bt, C)

    gamma = g_ref[...][:, 0, :]                                      # (bt, C) f32
    galpha = ga_ref[...][:, 0, :]
    beta = b_ref[...][:, 0, :]

    # out = gamma * ((x - mu) * rstd + means_n * alpha) + beta
    #     = x * scale + offset          with per-(b, c) scale/offset.
    scale_f32 = gamma * rstd
    offset_f32 = galpha * means_n - mu * scale_f32 + beta

    # Native-dtype apply pass: cast the tiny scale/offset once; the slab FMA then
    # runs in the input dtype (no full-block f32 temporary for bf16 inputs).
    scale = scale_f32.astype(o_ref.dtype)
    offset = offset_f32.astype(o_ref.dtype)
    o_ref[...] = (x_ref[...] * scale[:, :, None]
                  + offset[:, :, None]).astype(o_ref.dtype)


def _pick_batch_tile(batch: int, c: int, hw_pad: int, itemsize: int,
                     vmem_cap: int, block_cap_bytes=None) -> int:
    """Pick the per-block batch count `bt` (grid uses cdiv + batch padding)."""
    per_native = c * hw_pad * itemsize
    per_f32 = c * hw_pad * 4
    if block_cap_bytes is None:
        # ~8 MiB blocks on 128 MiB-VMEM parts (v5e/v6e), ~6 MiB on v7x (64 MiB).
        block_cap_bytes = (8 << 20) if vmem_cap >= (128 << 20) else (6 << 20)
    budget = min(96 << 20, (vmem_cap * 3) // 4) - (2 << 20)

    def footprint(bt):
        # double-buffered in + out blocks, plus the in-body f32 stat temporaries.
        return 4 * bt * per_native + 2 * bt * per_f32

    cands = []
    for bt in range(1, batch + 1):
        if bt * per_native > block_cap_bytes or footprint(bt) > budget:
            continue
        cands.append((bt, _cdiv(batch, bt)))
    if not cands:
        # TODO(synk): huge single-sample slabs need an HW-tiled two-pass variant.
        return 1

    best = max(bt for bt, _ in cands)
    g_best = _cdiv(batch, best)
    if g_best > 1 and g_best % 2:
        # Prefer an even grid length (keeps both v7x TensorCores busy) as long as
        # the block stays at least half the size of the best candidate.
        even = [bt for bt, g in cands if g % 2 == 0 and 2 * bt >= best]
        if even:
            best = max(even)
    return best


def conditional_instance_norm_2d_plus(x, y, embed_weight, *, bias: bool = True,
                                      in_eps: float = 1e-5,
                                      stat_eps: float = 1e-5,
                                      block_cap_bytes=None):
    """x: (B, C, H, W); y: (B,) int class ids; embed_weight: (num_classes, 3C|2C)."""
    B, C, H, W = x.shape
    HW = H * W
    hw_pad = _cdiv(HW, 128) * 128          # lane-dense stores (unmasked vst)

    # Embedding lookup (tiny gather) stays in plain JAX outside the kernel.
    e = jnp.take(embed_weight, y, axis=0).astype(jnp.float32)
    if bias:
        gamma, alpha, beta = e[:, :C], e[:, C:2 * C], e[:, 2 * C:]
    else:
        gamma, alpha = e[:, :C], e[:, C:]
        beta = jnp.zeros_like(gamma)
    galpha = gamma * alpha                 # offset uses gamma*alpha, pre-multiplied

    itemsize = jnp.dtype(x.dtype).itemsize
    try:
        vmem_cap = int(getattr(pltpu.get_tpu_info(), "vmem_capacity_bytes"))
    except Exception:                       # noqa: BLE001 - conservative fallback
        vmem_cap = 64 << 20                 # v7x-sized assumption if query fails

    bt = _pick_batch_tile(B, C, hw_pad, itemsize, vmem_cap, block_cap_bytes)
    n_blocks = _cdiv(B, bt)
    B_pad = n_blocks * bt

    # Pad spatial dim to a lane multiple and (if needed) batch to a tile multiple.
    x3 = x.reshape(B, C, HW)
    if hw_pad != HW or B_pad != B:
        x3 = jnp.pad(x3, ((0, B_pad - B), (0, 0), (0, hw_pad - HW)))

    def _prep(p):                           # (B, C) f32 -> (B_pad, 1, C) f32
        if B_pad != B:
            p = jnp.pad(p, ((0, B_pad - B), (0, 0)))
        return p.reshape(B_pad, 1, C)

    gamma_p, galpha_p, beta_p = _prep(gamma), _prep(galpha), _prep(beta)

    # VMEM budgeting: double-buffered in/out blocks + in-body f32 temporaries.
    blk_native = bt * C * hw_pad * itemsize
    blk_f32 = bt * C * hw_pad * 4
    vmem_need = 4 * blk_native + 2 * blk_f32 + (2 << 20)
    vmem_limit = None
    if vmem_need > (16 << 20):              # only raise above the smallest default
        vmem_limit = int(min(vmem_need, min(96 << 20, (vmem_cap * 3) // 4)))

    cost = pl.CostEstimate(
        flops=int(8 * B_pad * C * hw_pad),
        transcendentals=int(2 * B_pad * C + 2 * B_pad),
        bytes_accessed=int(2 * B_pad * C * hw_pad * itemsize + 3 * B_pad * C * 4),
    )

    kernel = functools.partial(_cond_instnorm_kernel, hw=HW,
                               in_eps=in_eps, stat_eps=stat_eps)

    out3 = pl.pallas_call(
        kernel,
        out_shape=jax.ShapeDtypeStruct((B_pad, C, hw_pad), x.dtype),
        grid_spec=pltpu.PrefetchScalarGridSpec(
            num_scalar_prefetch=0,
            grid=(n_blocks,),
            in_specs=[
                pl.BlockSpec((bt, C, hw_pad), lambda b: (b, 0, 0)),   # x slab
                pl.BlockSpec((bt, 1, C), lambda b: (b, 0, 0)),        # gamma
                pl.BlockSpec((bt, 1, C), lambda b: (b, 0, 0)),        # gamma*alpha
                pl.BlockSpec((bt, 1, C), lambda b: (b, 0, 0)),        # beta
            ],
            out_specs=pl.BlockSpec((bt, C, hw_pad), lambda b: (b, 0, 0)),
        ),
        compiler_params=pltpu.CompilerParams(
            dimension_semantics=("parallel",),
            vmem_limit_bytes=vmem_limit),
        cost_estimate=cost,
    )(x3, gamma_p, galpha_p, beta_p)

    return out3[:B, :, :HW].reshape(B, C, H, W)


def _reference(x, y, embed_weight, *, bias: bool = True):
    # Pure-JAX reference mirroring the PyTorch module.
    B, C, H, W = x.shape
    xf = x.astype(jnp.float32)
    means = jnp.mean(xf, axis=(2, 3))                            # (B, C)
    m = jnp.mean(means, axis=-1, keepdims=True)
    v = jnp.var(means, axis=-1, keepdims=True, ddof=1)           # unbiased (torch.var)
    means_n = (means - m) / jnp.sqrt(v + 1e-5)
    mu = jnp.mean(xf, axis=(2, 3), keepdims=True)
    var = jnp.var(xf, axis=(2, 3), keepdims=True)                # biased (InstanceNorm2d)
    h = (xf - mu) / jnp.sqrt(var + 1e-5)
    e = embed_weight[y].astype(jnp.float32)
    if bias:
        gamma, alpha, beta = e[:, :C], e[:, C:2 * C], e[:, 2 * C:]
    else:
        gamma, alpha = e[:, :C], e[:, C:]
        beta = jnp.zeros_like(gamma)
    h = h + means_n[:, :, None, None] * alpha[:, :, None, None]
    out = gamma[:, :, None, None] * h + beta[:, :, None, None]
    return out.astype(x.dtype)


if __name__ == "__main__":
    key = jax.random.PRNGKey(0)
    k1, k2, k3 = jax.random.split(key, 3)

    def run_case(k, B, C, H, W, num_classes, bias, block_cap_bytes=None):
        kx, ke, ky = jax.random.split(k, 3)
        x = jax.random.normal(kx, (B, C, H, W), dtype=jnp.float32) + 0.5
        if bias:
            # PyTorch init: first 2C cols ~ N(1, 0.02), last C cols zero.
            embed_weight = jnp.concatenate(
                [1.0 + 0.02 * jax.random.normal(ke, (num_classes, 2 * C), jnp.float32),
                 jnp.zeros((num_classes, C), jnp.float32)], axis=-1)
        else:
            embed_weight = 1.0 + 0.02 * jax.random.normal(
                ke, (num_classes, 2 * C), jnp.float32)
        y = jax.random.randint(ky, (B,), 0, num_classes)

        out = conditional_instance_norm_2d_plus(
            x, y, embed_weight, bias=bias, block_cap_bytes=block_cap_bytes)
        out = jax.block_until_ready(out)
        ref = _reference(x, y, embed_weight, bias=bias)
        assert out.shape == x.shape
        err = float(jnp.max(jnp.abs(out - ref)))
        assert err < 1e-4, f"max abs err {err}"

    # Lane-dense HW (256), single block per grid.
    run_case(k1, B=2, C=8, H=16, W=16, num_classes=10, bias=True)
    # HW = 100 -> padded to 128: masked variance pass, lane-dense stores.
    run_case(k2, B=4, C=8, H=10, W=10, num_classes=10, bias=True)
    # Odd batch + tiny block cap -> bt=2, grid=3, batch padded to 6; bias=False path.
    run_case(k3, B=5, C=8, H=16, W=16, num_classes=10, bias=False,
             block_cap_bytes=20_000)

    print("KERNEL_OK")
</pallas_src>

<mosaic_0001>
module attributes {stable_mosaic.version = 11 : i64} {
  func.func @_cond_instnorm_kernel(%arg0: i32, %arg1: memref<2x8x256xf32, #tpu.memory_space<vmem>>, %arg2: memref<2x1x8xf32, #tpu.memory_space<vmem>>, %arg3: memref<2x1x8xf32, #tpu.memory_space<vmem>>, %arg4: memref<2x1x8xf32, #tpu.memory_space<vmem>>, %arg5: memref<2x8x256xf32, #tpu.memory_space<vmem>>) attributes {dimension_semantics = [#tpu.dimension_semantics<parallel>], iteration_bounds = array<i64: 1>, scalar_prefetch = 0 : i64, scratch_operands = 0 : i64, tpu.core_type = #tpu.core_type<tc>, window_params = [{transform_indices = @transform_0, window_bounds = array<i64: 2, 8, 256>}, {transform_indices = @transform_1, window_bounds = array<i64: 2, 1, 8>}, {transform_indices = @transform_2, window_bounds = array<i64: 2, 1, 8>}, {transform_indices = @transform_3, window_bounds = array<i64: 2, 1, 8>}, {transform_indices = @transform_4, window_bounds = array<i64: 2, 8, 256>}]} {
    %c0 = arith.constant 0 : index
    %c0_0 = arith.constant 0 : index
    %c0_1 = arith.constant 0 : index
    %0 = vector.load %arg1[%c0, %c0_0, %c0_1] : memref<2x8x256xf32, #tpu.memory_space<vmem>>, vector<2x8x256xf32>
    %cst = arith.constant dense<0.000000e+00> : vector<2x8xf32>
    %1 = vector.multi_reduction <add>, %0, %cst [2] : vector<2x8x256xf32> to vector<2x8xf32>
    %cst_2 = arith.constant 3.906250e-03 : f32
    %2 = vector.broadcast %cst_2 : f32 to vector<2x8xf32>
    %3 = arith.mulf %1, %2 : vector<2x8xf32>
    %c0_3 = arith.constant 0 : index
    %c0_4 = arith.constant 0 : index
    %c0_5 = arith.constant 0 : index
    %4 = vector.load %arg1[%c0_3, %c0_4, %c0_5] : memref<2x8x256xf32, #tpu.memory_space<vmem>>, vector<2x8x256xf32>
    %5 = vector.shape_cast %3 : vector<2x8xf32> to vector<2x8x1xf32>
    %6 = vector.broadcast %5 : vector<2x8x1xf32> to vector<2x8x256xf32>
    %7 = arith.subf %4, %6 : vector<2x8x256xf32>
    %8 = arith.mulf %7, %7 : vector<2x8x256xf32>
    %cst_6 = arith.constant dense<0.000000e+00> : vector<2x8xf32>
    %9 = vector.multi_reduction <add>, %8, %cst_6 [2] : vector<2x8x256xf32> to vector<2x8xf32>
    %cst_7 = arith.constant 3.906250e-03 : f32
    %10 = vector.broadcast %cst_7 : f32 to vector<2x8xf32>
    %11 = arith.mulf %9, %10 : vector<2x8xf32>
    %cst_8 = arith.constant 9.99999974E-6 : f32
    %12 = vector.broadcast %cst_8 : f32 to vector<2x8xf32>
    %13 = arith.addf %11, %12 : vector<2x8xf32>
    %14 = math.rsqrt %13 : vector<2x8xf32>
    %cst_9 = arith.constant dense<0.000000e+00> : vector<2xf32>
    %15 = vector.multi_reduction <add>, %3, %cst_9 [1] : vector<2x8xf32> to vector<2xf32>
    %16 = vector.shape_cast %15 : vector<2xf32> to vector<2x1xf32>
    %cst_10 = arith.constant 8.000000e+00 : f32
    %17 = vector.broadcast %cst_10 : f32 to vector<2x1xf32>
    %18 = arith.divf %16, %17 : vector<2x1xf32>
    %19 = vector.broadcast %18 : vector<2x1xf32> to vector<2x8xf32>
    %20 = arith.subf %3, %19 : vector<2x8xf32>
    %21 = arith.mulf %20, %20 : vector<2x8xf32>
    %cst_11 = arith.constant dense<0.000000e+00> : vector<2xf32>
    %22 = vector.multi_reduction <add>, %21, %cst_11 [1] : vector<2x8xf32> to vector<2xf32>
    %23 = vector.shape_cast %22 : vector<2xf32> to vector<2x1xf32>
    %cst_12 = arith.constant 7.000000e+00 : f32
    %24 = vector.broadcast %cst_12 : f32 to vector<2x1xf32>
    %25 = arith.divf %23, %24 : vector<2x1xf32>
    %cst_13 = arith.constant 9.99999974E-6 : f32
    %26 = vector.broadcast %cst_13 : f32 to vector<2x1xf32>
    %27 = arith.addf %25, %26 : vector<2x1xf32>
    %28 = math.rsqrt %27 : vector<2x1xf32>
    %29 = vector.broadcast %28 : vector<2x1xf32> to vector<2x8xf32>
    %30 = arith.mulf %20, %29 : vector<2x8xf32>
    %c0_14 = arith.constant 0 : index
    %c0_15 = arith.constant 0 : index
    %c0_16 = arith.constant 0 : index
    %31 = vector.load %arg2[%c0_14, %c0_15, %c0_16] : memref<2x1x8xf32, #tpu.memory_space<vmem>>, vector<2x1x8xf32>
    %32 = vector.shape_cast %31 : vector<2x1x8xf32> to vector<2x8xf32>
    %c0_17 = arith.constant 0 : index
    %c0_18 = arith.constant 0 : index
    %c0_19 = arith.constant 0 : index
    %33 = vector.load %arg3[%c0_17, %c0_18, %c0_19] : memref<2x1x8xf32, #tpu.memory_space<vmem>>, vector<2x1x8xf32>
    %34 = vector.shape_cast %33 : vector<2x1x8xf32> to vector<2x8xf32>
    %c0_20 = arith.constant 0 : index
    %c0_21 = arith.constant 0 : index
    %c0_22 = arith.constant 0 : index
    %35 = vector.load %arg4[%c0_20, %c0_21, %c0_22] : memref<2x1x8xf32, #tpu.memory_space<vmem>>, vector<2x1x8xf32>
    %36 = vector.shape_cast %35 : vector<2x1x8xf32> to vector<2x8xf32>
    %37 = arith.mulf %32, %14 : vector<2x8xf32>
    %38 = arith.mulf %34, %30 : vector<2x8xf32>
    %39 = arith.mulf %3, %37 : vector<2x8xf32>
    %40 = arith.subf %38, %39 : vector<2x8xf32>
    %41 = arith.addf %40, %36 : vector<2x8xf32>
    %c0_23 = arith.constant 0 : index
    %c0_24 = arith.constant 0 : index
    %c0_25 = arith.constant 0 : index
    %42 = vector.load %arg1[%c0_23, %c0_24, %c0_25] : memref<2x8x256xf32, #tpu.memory_space<vmem>>, vector<2x8x256xf32>
    %43 = vector.shape_cast %37 : vector<2x8xf32> to vector<2x8x1xf32>
    %44 = vector.broadcast %43 : vector<2x8x1xf32> to vector<2x8x256xf32>
    %45 = arith.mulf %42, %44 : vector<2x8x256xf32>
    %46 = vector.shape_cast %41 : vector<2x8xf32> to vector<2x8x1xf32>
    %47 = vector.broadcast %46 : vector<2x8x1xf32> to vector<2x8x256xf32>
    %48 = arith.addf %45, %47 : vector<2x8x256xf32>
    %c0_26 = arith.constant 0 : index
    %c0_27 = arith.constant 0 : index
    %c0_28 = arith.constant 0 : index
    %49 = vector.load %arg5[%c0_26, %c0_27, %c0_28] : memref<2x8x256xf32, #tpu.memory_space<vmem>>, vector<2x8x256xf32>
    tpu.vector_store %arg5[%c0_26, %c0_27, %c0_28], %48 {strides = array<i32>} : memref<2x8x256xf32, #tpu.memory_space<vmem>>, vector<2x8x256xf32>,
    return
  }
  func.func @transform_0(%arg0: i32) -> (i32, i32, i32) {
    %c0_i32 = arith.constant 0 : i32
    %c0_i32_0 = arith.constant 0 : i32
    %c0_i32_1 = arith.constant 0 : i32
    return %arg0, %c0_i32, %c0_i32_0 : i32, i32, i32
  }
  func.func @transform_1(%arg0: i32) -> (i32, i32, i32) {
    %c0_i32 = arith.constant 0 : i32
    %c0_i32_0 = arith.constant 0 : i32
    %c0_i32_1 = arith.constant 0 : i32
    return %arg0, %c0_i32, %c0_i32_0 : i32, i32, i32
  }
  func.func @transform_2(%arg0: i32) -> (i32, i32, i32) {
    %c0_i32 = arith.constant 0 : i32
    %c0_i32_0 = arith.constant 0 : i32
    %c0_i32_1 = arith.constant 0 : i32
    return %arg0, %c0_i32, %c0_i32_0 : i32, i32, i32
  }
  func.func @transform_3(%arg0: i32) -> (i32, i32, i32) {
    %c0_i32 = arith.constant 0 : i32
    %c0_i32_0 = arith.constant 0 : i32
    %c0_i32_1 = arith.constant 0 : i32
    return %arg0, %c0_i32, %c0_i32_0 : i32, i32, i32
  }
  func.func @transform_4(%arg0: i32) -> (i32, i32, i32) {
    %c0_i32 = arith.constant 0 : i32
    %c0_i32_0 = arith.constant 0 : i32
    %c0_i32_1 = arith.constant 0 : i32
    return %arg0, %c0_i32, %c0_i32_0 : i32, i32, i32
  }
}

</mosaic_0001>

<llo_original>
// kernel: tpu_custom_call.1
$region0: #{tpu_custom_call.1}
  #allocation0 [shape = 'u32[]', space=smem, size = 0x4, offset = 0x4, fixed_abs, tag = 'smem constant byte address 0x4 - core index']
  #allocation1 [shape = 'u32[144,128]{1,0:T(1,128)}', space=vmem, size = 0x12000, scoped, tag = 'internal scratch']
  %s0 = inlined_call_operand.hbm [shape: f32[2,8,256], index: 0, kind: input, shape index: {}]
  %s1 = inlined_call_operand.vmem [shape: f32[2,1,8], index: 1, kind: input, shape index: {}]
  %s2 = inlined_call_operand.vmem [shape: f32[2,1,8], index: 2, kind: input, shape index: {}]
  %s3 = inlined_call_operand.vmem [shape: f32[2,1,8], index: 3, kind: input, shape index: {}]
  %s4 = inlined_call_operand.hbm [shape: f32[2,8,256], index: 4, kind: output, shape index: {}]
  %s5 = sld [smem:[#allocation0]]
  $region30: #{tpu_custom_call.1} parent=0
    _
  %s7 = ssub.s32 1, %s5
  %s8 = scalar_select 0, %s7, %s5
  $region1: #{tpu_custom_call.1} parent=0
    #allocation2 [shape = 'u8[16384]{0}', space=vmem, size = 0x4000, scoped, tag = 'input window, operand 0, single buffered']
    #allocation3 [shape = 's32[1]{0}', space=sflag, size = 0x4, scoped, tag = 'scoped memory for tpu_custom_call.1']
    #allocation4 [shape = 's32[1]{0}', space=sflag, size = 0x4, scoped, tag = 'scoped memory for tpu_custom_call.1']
    #allocation5 [shape = 'u8[16384]{0}', space=vmem, size = 0x4000, scoped, tag = 'output window, operand 0, single buffered']
    %9 = vsyncpa [#allocation3], 0
    %10 = vsyncpa [#allocation4], 0
    // Predicated region
    $region2: #{tpu_custom_call.1} parent=1 // pred_check
      _
    $region3: #{tpu_custom_call.1} parent=1 // pred_check_branch
      %12 = sbr.rel (0) target = $region5
    $region4: #{tpu_custom_call.1} parent=1 // pred_region
      %s14 = ssub.s32 512, 512
      %15 = vsyncadd [#allocation3], %s14
      %s16 = sshll.u32 [#allocation2], 4
      %s17 = int_to_ptr.vmem [resolvable:$true] %s16
      %22 = dma.hbm_to_vmem [thread:$0]  %s0, 512, %s17, [#allocation3], 256, 256, 16
    $region5: #{tpu_custom_call.1} parent=1 // pred_fallthru
      _
    // Predicated region
    $region6: #{tpu_custom_call.1} parent=1 // pred_check
      _
    $region7: #{tpu_custom_call.1} parent=1 // pred_check_branch
      %24 = sbr.rel (0) target = $region9
    $region8: #{tpu_custom_call.1} parent=1 // pred_region
      _
    $region9: #{tpu_custom_call.1} parent=1 // pred_fallthru
      _
    // Predicated region
    $region10: #{tpu_custom_call.1} parent=1 // pred_check
      _
    $region11: #{tpu_custom_call.1} parent=1 // pred_check_branch
      %26 = sbr.rel (0) target = $region13
    $region12: #{tpu_custom_call.1} parent=1 // pred_region
      _
    $region13: #{tpu_custom_call.1} parent=1 // pred_fallthru
      _
    // Predicated region
    $region14: #{tpu_custom_call.1} parent=1 // pred_check
      _
    $region15: #{tpu_custom_call.1} parent=1 // pred_check_branch
      %28 = sbr.rel (0) target = $region17
    $region16: #{tpu_custom_call.1} parent=1 // pred_region
      _
    $region17: #{tpu_custom_call.1} parent=1 // pred_fallthru
      _
    // Predicated region
    $region18: #{tpu_custom_call.1} parent=1 // pred_check
      _
    $region19: #{tpu_custom_call.1} parent=1 // pred_check_branch
      %30 = sbr.rel (0) target = $region21
    $region20: #{tpu_custom_call.1} parent=1 // pred_region
      %31 = dma.done [#allocation3], 512
    $region21: #{tpu_custom_call.1} parent=1 // pred_fallthru
      _
    %v32 = vld [vmem:[#allocation2] sm:$0xff]
    %v33 = vld [vmem:[#allocation2 + $0x8] sm:$0xff]
    %v34 = vld [vmem:[#allocation2 + $0x10] sm:$0xff]
    %v35 = vld [vmem:[#allocation2 + $0x18] sm:$0xff]
    %v36 = vadd.f32 %v32, %v33
    %37 = vadd.xlane.f32.xlu0 %v36
    %v38 = vpop.xlane.xlu0 %37
    %v39 = vadd.f32 %v34, %v35
    %40 = vadd.xlane.f32.xlu0 %v39
    %v41 = vpop.xlane.xlu0 %40
    %v42 = vmul.f32 %v38, 0.00390625
    %v43 = vmul.f32 %v41, 0.00390625
    %v44 = vsub.f32 %v32, %v42
    %v45 = vsub.f32 %v33, %v42
    %v46 = vsub.f32 %v34, %v43
    %v47 = vsub.f32 %v35, %v43
    %v48 = vmul.f32 %v44, %v44
    %v49 = vmul.f32 %v45, %v45
    %v50 = vmul.f32 %v46, %v46
    %v51 = vmul.f32 %v47, %v47
    %v52 = vadd.f32 %v48, %v49
    %53 = vadd.xlane.f32.xlu0 %v52
    %v54 = vpop.xlane.xlu0 %53
    %v55 = vadd.f32 %v50, %v51
    %56 = vadd.xlane.f32.xlu0 %v55
    %v57 = vpop.xlane.xlu0 %56
    %v58 = vmul.f32 %v54, 0.00390625
    %v59 = vmul.f32 %v57, 0.00390625
    %v60 = vadd.f32 %v58, 1e-05
    %v61 = vadd.f32 %v59, 1e-05
    %v62 = vrsqrt.pop %v60
    %v63 = vrsqrt.pop %v61
    %v66 = vlaneseq
    %v67 = vand.u32 %v66, 127
    %v68 = vlaneseq
    %v69 = vshrl.u32 %v68, 7
    %v70 = vsub.s32 %v67, %v69
    %v71 = vrot.slane %v42, %v70
    %v72 = vlaneseq
    %v73 = vshrl.u32 %v72, 7
    %v74 = vsub.s32 %v67, %v73
    %v75 = vrot.slane %v43, %v74
    %vm76 = vcmask 1041409
    %v77 = vsel %vm76, %v75, %v71
    %vm79 = vcmask 58368
    %v80 = vsel %vm79, %v77, 0.0
    %81 = vadd.xlane.f32.xlu0 %v80
    %v82 = vpop.xlane.xlu0 %81
    %v83 = vrcp.pop 8.0
    %v84 = vmul.f32 %v82, %v83
    %v86 = vlaneseq
    %v87 = vshrl.u32 %v86, 7
    %v88 = vsub.s32 0, %v87
    %v89 = vrot.slane %v84, %v88
    %v90 = vlaneseq
    %v91 = vshrl.u32 %v90, 7
    %v92 = vsub.s32 1, %v91
    %v93 = vrot.slane %v84, %v92
    %v96 = vsub.f32 %v42, %v89
    %v97 = vsub.f32 %v43, %v93
    %v98 = vmul.f32 %v96, %v96
    %v99 = vmul.f32 %v97, %v97
    %102 = vset.pattern.permute.xlu0 0
    %103 = vperm.xlu0 %102, %v98
    %v104 = vpop.permute.xlu0 %103
    %105 = vset.pattern.permute.xlu0 0
    %106 = vperm.xlu0 %105, %v99
    %v107 = vpop.permute.xlu0 %106
    %v108 = vlaneseq
    %v109 = vshrl.u32 %v108, 7
    %v110 = vsub.s32 %v67, %v109
    %v111 = vrot.slane %v104, %v110
    %v112 = vlaneseq
    %v113 = vshrl.u32 %v112, 7
    %v114 = vsub.s32 %v67, %v113
    %v115 = vrot.slane %v107, %v114
    %v116 = vsel %vm76, %v115, %v111
    %v118 = vsel %vm79, %v116, 0.0
    %119 = vadd.xlane.f32.xlu0 %v118
    %v120 = vpop.xlane.xlu0 %119
    %v121 = vrcp.pop 7.0
    %v122 = vmul.f32 %v120, %v121
    %v123 = vadd.f32 %v122, 1e-05
    %v124 = vrsqrt.pop %v123
    %v126 = vlaneseq
    %v127 = vshrl.u32 %v126, 7
    %v128 = vsub.s32 0, %v127
    %v129 = vrot.slane %v124, %v128
    %v130 = vlaneseq
    %v131 = vshrl.u32 %v130, 7
    %v132 = vsub.s32 1, %v131
    %v133 = vrot.slane %v124, %v132
    %v136 = vmul.f32 %v96, %v129
    %v137 = vmul.f32 %v97, %v133
    %v138 = vld [vmem:[%s1] sm:$0x1]
    %v139 = vld [vmem:[%s1 + $0x1] sm:$0x1]
    %v140 = vld [vmem:[%s2] sm:$0x1]
    %v141 = vld [vmem:[%s2 + $0x1] sm:$0x1]
    %v142 = vld [vmem:[%s3] sm:$0x1]
    %v143 = vld [vmem:[%s3 + $0x1] sm:$0x1]
    %v146 = vlaneseq
    %v147 = vshrl.u32 %v146, 7
    %v148 = vsub.s32 0, %v147
    %v149 = vrot.slane %v62, %v148
    %v150 = vlaneseq
    %v151 = vshrl.u32 %v150, 7
    %v152 = vsub.s32 1, %v151
    %v153 = vrot.slane %v62, %v152
    %v154 = vlaneseq
    %v155 = vshrl.u32 %v154, 7
    %v156 = vsub.s32 2, %v155
    %v157 = vrot.slane %v62, %v156
    %v158 = vlaneseq
    %v159 = vshrl.u32 %v158, 7
    %v160 = vsub.s32 3, %v159
    %v161 = vrot.slane %v62, %v160
    %v162 = vlaneseq
    %v163 = vshrl.u32 %v162, 7
    %v164 = vsub.s32 4, %v163
    %v165 = vrot.slane %v62, %v164
    %v166 = vlaneseq
    %v167 = vshrl.u32 %v166, 7
    %v168 = vsub.s32 5, %v167
    %v169 = vrot.slane %v62, %v168
    %v170 = vlaneseq
    %v171 = vshrl.u32 %v170, 7
    %v172 = vsub.s32 6, %v171
    %v173 = vrot.slane %v62, %v172
    %v174 = vlaneseq
    %v175 = vshrl.u32 %v174, 7
    %v176 = vsub.s32 7, %v175
    %v177 = vrot.slane %v62, %v176
    %v178 = vlaneseq
    %v179 = vshrl.u32 %v178, 7
    %v180 = vsub.s32 0, %v179
    %v181 = vrot.slane %v63, %v180
    %v182 = vlaneseq
    %v183 = vshrl.u32 %v182, 7
    %v184 = vsub.s32 1, %v183
    %v185 = vrot.slane %v63, %v184
    %v186 = vlaneseq
    %v187 = vshrl.u32 %v186, 7
    %v188 = vsub.s32 2, %v187
    %v189 = vrot.slane %v63, %v188
    %v190 = vlaneseq
    %v191 = vshrl.u32 %v190, 7
    %v192 = vsub.s32 3, %v191
    %v193 = vrot.slane %v63, %v192
    %v194 = vlaneseq
    %v195 = vshrl.u32 %v194, 7
    %v196 = vsub.s32 4, %v195
    %v197 = vrot.slane %v63, %v196
    %v198 = vlaneseq
    %v199 = vshrl.u32 %v198, 7
    %v200 = vsub.s32 5, %v199
    %v201 = vrot.slane %v63, %v200
    %v202 = vlaneseq
    %v203 = vshrl.u32 %v202, 7
    %v204 = vsub.s32 6, %v203
    %v205 = vrot.slane %v63, %v204
    %v206 = vlaneseq
    %v207 = vshrl.u32 %v206, 7
    %v208 = vsub.s32 7, %v207
    %v209 = vrot.slane %v63, %v208
    %v210 = vcombine.low %v149, %v153
    %v211 = vcombine.low %v157, %v161
    %v212 = vcombine.low %v165, %v169
    %v213 = vcombine.low %v173, %v177
    %v215 = vunpack.c.l.s4 1966171168
    %v216 = vunpack.c.0.s8 %v215
    %v217 = vlaneseq
    %v218 = vshrl.u32 %v217, 7
    %v219 = vsub.s32 %v216, %v218
    %v220 = vrot.slane %v210, %v219
    %v222 = vunpack.c.l.s4 1966171168
    %v223 = vunpack.c.0.s8 %v222
    %v224 = vlaneseq
    %v225 = vshrl.u32 %v224, 7
    %v226 = vsub.s32 %v223, %v225
    %v227 = vrot.slane %v211, %v226
    %v229 = vunpack.c.l.s4 1966171168
    %v230 = vunpack.c.0.s8 %v229
    %v231 = vlaneseq
    %v232 = vshrl.u32 %v231, 7
    %v233 = vsub.s32 %v230, %v232
    %v234 = vrot.slane %v212, %v233
    %v236 = vunpack.c.l.s4 1966171168
    %v237 = vunpack.c.0.s8 %v236
    %v238 = vlaneseq
    %v239 = vshrl.u32 %v238, 7
    %v240 = vsub.s32 %v237, %v239
    %v241 = vrot.slane %v213, %v240
    %v242 = vcombine.low %v220, %v227
    %v243 = vcombine.low %v234, %v241
    %v245 = vunpack.c.l.s4 1966171168
    %v246 = vunpack.c.0.s8 %v245
    %v247 = vlaneseq
    %v248 = vshrl.u32 %v247, 7
    %v249 = vsub.s32 %v246, %v248
    %v250 = vrot.slane %v242, %v249
    %v252 = vunpack.c.l.s4 1966171168
    %v253 = vunpack.c.0.s8 %v252
    %v254 = vlaneseq
    %v255 = vshrl.u32 %v254, 7
    %v256 = vsub.s32 %v253, %v255
    %v257 = vrot.slane %v243, %v256
    %v258 = vcombine.low %v250, %v257
    %v259 = vcombine.low %v181, %v185
    %v260 = vcombine.low %v189, %v193
    %v261 = vcombine.low %v197, %v201
    %v262 = vcombine.low %v205, %v209
    %v264 = vunpack.c.l.s4 1966171168
    %v265 = vunpack.c.0.s8 %v264
    %v266 = vlaneseq
    %v267 = vshrl.u32 %v266, 7
    %v268 = vsub.s32 %v265, %v267
    %v269 = vrot.slane %v259, %v268
    %v271 = vunpack.c.l.s4 1966171168
    %v272 = vunpack.c.0.s8 %v271
    %v273 = vlaneseq
    %v274 = vshrl.u32 %v273, 7
    %v275 = vsub.s32 %v272, %v274
    %v276 = vrot.slane %v260, %v275
    %v278 = vunpack.c.l.s4 1966171168
    %v279 = vunpack.c.0.s8 %v278
    %v280 = vlaneseq
    %v281 = vshrl.u32 %v280, 7
    %v282 = vsub.s32 %v279, %v281
    %v283 = vrot.slane %v261, %v282
    %v285 = vunpack.c.l.s4 1966171168
    %v286 = vunpack.c.0.s8 %v285
    %v287 = vlaneseq
    %v288 = vshrl.u32 %v287, 7
    %v289 = vsub.s32 %v286, %v288
    %v290 = vrot.slane %v262, %v289
    %v291 = vcombine.low %v269, %v276
    %v292 = vcombine.low %v283, %v290
    %v294 = vunpack.c.l.s4 1966171168
    %v295 = vunpack.c.0.s8 %v294
    %v296 = vlaneseq
    %v297 = vshrl.u32 %v296, 7
    %v298 = vsub.s32 %v295, %v297
    %v299 = vrot.slane %v291, %v298
    %v301 = vunpack.c.l.s4 1966171168
    %v302 = vunpack.c.0.s8 %v301
    %v303 = vlaneseq
    %v304 = vshrl.u32 %v303, 7
    %v305 = vsub.s32 %v302, %v304
    %v306 = vrot.slane %v292, %v305
    %v307 = vcombine.low %v299, %v306
    %308 = vset.pattern.permute.xlu0 0
    %309 = vperm.xlu0 %308, %v258
    %v310 = vpop.permute.xlu0 %309
    %311 = vset.pattern.permute.xlu0 0
    %312 = vperm.xlu0 %311, %v307
    %v313 = vpop.permute.xlu0 %312
    %v314 = vlaneseq
    %v315 = vshrl.u32 %v314, 7
    %v316 = vsub.s32 %v67, %v315
    %v317 = vrot.slane %v310, %v316
    %v318 = vlaneseq
    %v319 = vshrl.u32 %v318, 7
    %v320 = vsub.s32 %v67, %v319
    %v321 = vrot.slane %v313, %v320
    %v323 = vunpack.c.l.s4 1966171168
    %v324 = vunpack.c.0.s8 %v323
    %v325 = vlaneseq
    %v326 = vshrl.u32 %v325, 7
    %v327 = vsub.s32 %v324, %v326
    %v328 = vrot.slane %v317, %v327
    %v330 = vunpack.c.l.s4 1966171168
    %v331 = vunpack.c.0.s8 %v330
    %v332 = vlaneseq
    %v333 = vshrl.u32 %v332, 7
    %v334 = vsub.s32 %v331, %v333
    %v335 = vrot.slane %v328, %v334
    %v337 = vunpack.c.l.s4 1966171168
    %v338 = vunpack.c.0.s8 %v337
    %v339 = vlaneseq
    %v340 = vshrl.u32 %v339, 7
    %v341 = vsub.s32 %v338, %v340
    %v342 = vrot.slane %v321, %v341
    %v344 = vunpack.c.l.s4 1966171168
    %v345 = vunpack.c.0.s8 %v344
    %v346 = vlaneseq
    %v347 = vshrl.u32 %v346, 7
    %v348 = vsub.s32 %v345, %v347
    %v349 = vrot.slane %v342, %v348
    %v352 = vmul.f32 %v138, %v335
    %v353 = vmul.f32 %v139, %v349
    %v356 = vcombine.high %v136, %v136
    %v358 = vunpack.c.l.s4 1966171168
    %v359 = vunpack.c.0.s8 %v358
    %v360 = vlaneseq
    %v361 = vshrl.u32 %v360, 7
    %v362 = vsub.s32 %v359, %v361
    %v363 = vrot.slane %v136, %v362
    %v365 = vunpack.c.l.s4 1966171168
    %v366 = vunpack.c.0.s8 %v365
    %v367 = vlaneseq
    %v368 = vshrl.u32 %v367, 7
    %v369 = vsub.s32 %v366, %v368
    %v370 = vrot.slane %v356, %v369
    %v371 = vcombine.high %v363, %v363
    %v372 = vcombine.high %v370, %v370
    %v374 = vunpack.c.l.s4 1966171168
    %v375 = vunpack.c.0.s8 %v374
    %v376 = vlaneseq
    %v377 = vshrl.u32 %v376, 7
    %v378 = vsub.s32 %v375, %v377
    %v379 = vrot.slane %v363, %v378
    %v381 = vunpack.c.l.s4 1966171168
    %v382 = vunpack.c.0.s8 %v381
    %v383 = vlaneseq
    %v384 = vshrl.u32 %v383, 7
    %v385 = vsub.s32 %v382, %v384
    %v386 = vrot.slane %v370, %v385
    %v388 = vunpack.c.l.s4 1966171168
    %v389 = vunpack.c.0.s8 %v388
    %v390 = vlaneseq
    %v391 = vshrl.u32 %v390, 7
    %v392 = vsub.s32 %v389, %v391
    %v393 = vrot.slane %v371, %v392
    %v395 = vunpack.c.l.s4 1966171168
    %v396 = vunpack.c.0.s8 %v395
    %v397 = vlaneseq
    %v398 = vshrl.u32 %v397, 7
    %v399 = vsub.s32 %v396, %v398
    %v400 = vrot.slane %v372, %v399
    %v401 = vcombine.high %v379, %v379
    %v402 = vcombine.high %v386, %v386
    %v403 = vcombine.high %v393, %v393
    %v404 = vcombine.high %v400, %v400
    %v405 = vcombine.high %v137, %v137
    %v407 = vunpack.c.l.s4 1966171168
    %v408 = vunpack.c.0.s8 %v407
    %v409 = vlaneseq
    %v410 = vshrl.u32 %v409, 7
    %v411 = vsub.s32 %v408, %v410
    %v412 = vrot.slane %v137, %v411
    %v414 = vunpack.c.l.s4 1966171168
    %v415 = vunpack.c.0.s8 %v414
    %v416 = vlaneseq
    %v417 = vshrl.u32 %v416, 7
    %v418 = vsub.s32 %v415, %v417
    %v419 = vrot.slane %v405, %v418
    %v420 = vcombine.high %v412, %v412
    %v421 = vcombine.high %v419, %v419
    %v423 = vunpack.c.l.s4 1966171168
    %v424 = vunpack.c.0.s8 %v423
    %v425 = vlaneseq
    %v426 = vshrl.u32 %v425, 7
    %v427 = vsub.s32 %v424, %v426
    %v428 = vrot.slane %v412, %v427
    %v430 = vunpack.c.l.s4 1966171168
    %v431 = vunpack.c.0.s8 %v430
    %v432 = vlaneseq
    %v433 = vshrl.u32 %v432, 7
    %v434 = vsub.s32 %v431, %v433
    %v435 = vrot.slane %v419, %v434
    %v437 = vunpack.c.l.s4 1966171168
    %v438 = vunpack.c.0.s8 %v437
    %v439 = vlaneseq
    %v440 = vshrl.u32 %v439, 7
    %v441 = vsub.s32 %v438, %v440
    %v442 = vrot.slane %v420, %v441
    %v444 = vunpack.c.l.s4 1966171168
    %v445 = vunpack.c.0.s8 %v444
    %v446 = vlaneseq
    %v447 = vshrl.u32 %v446, 7
    %v448 = vsub.s32 %v445, %v447
    %v449 = vrot.slane %v421, %v448
    %v450 = vcombine.high %v428, %v428
    %v451 = vcombine.high %v435, %v435
    %v452 = vcombine.high %v442, %v442
    %v453 = vcombine.high %v449, %v449
    %v454 = vcombine.low %v379, %v393
    %v455 = vcombine.low %v401, %v403
    %v456 = vcombine.low %v386, %v400
    %v457 = vcombine.low %v402, %v404
    %v459 = vunpack.c.l.s4 1966171168
    %v460 = vunpack.c.0.s8 %v459
    %v461 = vlaneseq
    %v462 = vshrl.u32 %v461, 7
    %v463 = vsub.s32 %v460, %v462
    %v464 = vrot.slane %v454, %v463
    %v466 = vunpack.c.l.s4 1966171168
    %v467 = vunpack.c.0.s8 %v466
    %v468 = vlaneseq
    %v469 = vshrl.u32 %v468, 7
    %v470 = vsub.s32 %v467, %v469
    %v471 = vrot.slane %v455, %v470
    %v473 = vunpack.c.l.s4 1966171168
    %v474 = vunpack.c.0.s8 %v473
    %v475 = vlaneseq
    %v476 = vshrl.u32 %v475, 7
    %v477 = vsub.s32 %v474, %v476
    %v478 = vrot.slane %v456, %v477
    %v480 = vunpack.c.l.s4 1966171168
    %v481 = vunpack.c.0.s8 %v480
    %v482 = vlaneseq
    %v483 = vshrl.u32 %v482, 7
    %v484 = vsub.s32 %v481, %v483
    %v485 = vrot.slane %v457, %v484
    %v486 = vcombine.low %v464, %v471
    %v487 = vcombine.low %v478, %v485
    %v489 = vunpack.c.l.s4 1966171168
    %v490 = vunpack.c.0.s8 %v489
    %v491 = vlaneseq
    %v492 = vshrl.u32 %v491, 7
    %v493 = vsub.s32 %v490, %v492
    %v494 = vrot.slane %v486, %v493
    %v496 = vunpack.c.l.s4 1966171168
    %v497 = vunpack.c.0.s8 %v496
    %v498 = vlaneseq
    %v499 = vshrl.u32 %v498, 7
    %v500 = vsub.s32 %v497, %v499
    %v501 = vrot.slane %v487, %v500
    %v502 = vcombine.low %v494, %v501
    %v503 = vcombine.low %v428, %v442
    %v504 = vcombine.low %v450, %v452
    %v505 = vcombine.low %v435, %v449
    %v506 = vcombine.low %v451, %v453
    %v508 = vunpack.c.l.s4 1966171168
    %v509 = vunpack.c.0.s8 %v508
    %v510 = vlaneseq
    %v511 = vshrl.u32 %v510, 7
    %v512 = vsub.s32 %v509, %v511
    %v513 = vrot.slane %v503, %v512
    %v515 = vunpack.c.l.s4 1966171168
    %v516 = vunpack.c.0.s8 %v515
    %v517 = vlaneseq
    %v518 = vshrl.u32 %v517, 7
    %v519 = vsub.s32 %v516, %v518
    %v520 = vrot.slane %v504, %v519
    %v522 = vunpack.c.l.s4 1966171168
    %v523 = vunpack.c.0.s8 %v522
    %v524 = vlaneseq
    %v525 = vshrl.u32 %v524, 7
    %v526 = vsub.s32 %v523, %v525
    %v527 = vrot.slane %v505, %v526
    %v529 = vunpack.c.l.s4 1966171168
    %v530 = vunpack.c.0.s8 %v529
    %v531 = vlaneseq
    %v532 = vshrl.u32 %v531, 7
    %v533 = vsub.s32 %v530, %v532
    %v534 = vrot.slane %v506, %v533
    %v535 = vcombine.low %v513, %v520
    %v536 = vcombine.low %v527, %v534
    %v538 = vunpack.c.l.s4 1966171168
    %v539 = vunpack.c.0.s8 %v538
    %v540 = vlaneseq
    %v541 = vshrl.u32 %v540, 7
    %v542 = vsub.s32 %v539, %v541
    %v543 = vrot.slane %v535, %v542
    %v545 = vunpack.c.l.s4 1966171168
    %v546 = vunpack.c.0.s8 %v545
    %v547 = vlaneseq
    %v548 = vshrl.u32 %v547, 7
    %v549 = vsub.s32 %v546, %v548
    %v550 = vrot.slane %v536, %v549
    %v551 = vcombine.low %v543, %v550
    %552 = vset.pattern.permute.xlu0 0
    %553 = vperm.xlu0 %552, %v502
    %v554 = vpop.permute.xlu0 %553
    %555 = vset.pattern.permute.xlu0 0
    %556 = vperm.xlu0 %555, %v551
    %v557 = vpop.permute.xlu0 %556
    %v558 = vlaneseq
    %v559 = vshrl.u32 %v558, 7
    %v560 = vsub.s32 %v67, %v559
    %v561 = vrot.slane %v554, %v560
    %v562 = vlaneseq
    %v563 = vshrl.u32 %v562, 7
    %v564 = vsub.s32 %v67, %v563
    %v565 = vrot.slane %v557, %v564
    %v567 = vunpack.c.l.s4 1966171168
    %v568 = vunpack.c.0.s8 %v567
    %v569 = vlaneseq
    %v570 = vshrl.u32 %v569, 7
    %v571 = vsub.s32 %v568, %v570
    %v572 = vrot.slane %v561, %v571
    %v574 = vunpack.c.l.s4 1966171168
    %v575 = vunpack.c.0.s8 %v574
    %v576 = vlaneseq
    %v577 = vshrl.u32 %v576, 7
    %v578 = vsub.s32 %v575, %v577
    %v579 = vrot.slane %v572, %v578
    %v581 = vunpack.c.l.s4 1966171168
    %v582 = vunpack.c.0.s8 %v581
    %v583 = vlaneseq
    %v584 = vshrl.u32 %v583, 7
    %v585 = vsub.s32 %v582, %v584
    %v586 = vrot.slane %v565, %v585
    %v588 = vunpack.c.l.s4 1966171168
    %v589 = vunpack.c.0.s8 %v588
    %v590 = vlaneseq
    %v591 = vshrl.u32 %v590, 7
    %v592 = vsub.s32 %v589, %v591
    %v593 = vrot.slane %v586, %v592
    %v596 = vmul.f32 %v140, %v579
    %v597 = vmul.f32 %v141, %v593
    %v600 = vlaneseq
    %v601 = vshrl.u32 %v600, 7
    %v602 = vsub.s32 0, %v601
    %v603 = vrot.slane %v352, %v602
    %v604 = vlaneseq
    %v605 = vshrl.u32 %v604, 7
    %v606 = vsub.s32 0, %v605
    %v607 = vrot.slane %v353, %v606
    %609 = vbcast.lane.b32.xlu0 %v603, 256
    %v610 = vpop.permute.xlu0 %609
    %612 = vbcast.lane.b32.xlu0 %v607, 256
    %v613 = vpop.permute.xlu0 %612
    %v616 = vmul.f32 %v42, %v610
    %v617 = vmul.f32 %v43, %v613
    %v620 = vcombine.high %v616, %v616
    %v622 = vunpack.c.l.s4 1966171168
    %v623 = vunpack.c.0.s8 %v622
    %v624 = vlaneseq
    %v625 = vshrl.u32 %v624, 7
    %v626 = vsub.s32 %v623, %v625
    %v627 = vrot.slane %v616, %v626
    %v629 = vunpack.c.l.s4 1966171168
    %v630 = vunpack.c.0.s8 %v629
    %v631 = vlaneseq
    %v632 = vshrl.u32 %v631, 7
    %v633 = vsub.s32 %v630, %v632
    %v634 = vrot.slane %v620, %v633
    %v635 = vcombine.high %v627, %v627
    %v636 = vcombine.high %v634, %v634
    %v638 = vunpack.c.l.s4 1966171168
    %v639 = vunpack.c.0.s8 %v638
    %v640 = vlaneseq
    %v641 = vshrl.u32 %v640, 7
    %v642 = vsub.s32 %v639, %v641
    %v643 = vrot.slane %v627, %v642
    %v645 = vunpack.c.l.s4 1966171168
    %v646 = vunpack.c.0.s8 %v645
    %v647 = vlaneseq
    %v648 = vshrl.u32 %v647, 7
    %v649 = vsub.s32 %v646, %v648
    %v650 = vrot.slane %v634, %v649
    %v652 = vunpack.c.l.s4 1966171168
    %v653 = vunpack.c.0.s8 %v652
    %v654 = vlaneseq
    %v655 = vshrl.u32 %v654, 7
    %v656 = vsub.s32 %v653, %v655
    %v657 = vrot.slane %v635, %v656
    %v659 = vunpack.c.l.s4 1966171168
    %v660 = vunpack.c.0.s8 %v659
    %v661 = vlaneseq
    %v662 = vshrl.u32 %v661, 7
    %v663 = vsub.s32 %v660, %v662
    %v664 = vrot.slane %v636, %v663
    %v665 = vcombine.high %v643, %v643
    %v666 = vcombine.high %v650, %v650
    %v667 = vcombine.high %v657, %v657
    %v668 = vcombine.high %v664, %v664
    %v669 = vcombine.high %v617, %v617
    %v671 = vunpack.c.l.s4 1966171168
    %v672 = vunpack.c.0.s8 %v671
    %v673 = vlaneseq
    %v674 = vshrl.u32 %v673, 7
    %v675 = vsub.s32 %v672, %v674
    %v676 = vrot.slane %v617, %v675
    %v678 = vunpack.c.l.s4 1966171168
    %v679 = vunpack.c.0.s8 %v678
    %v680 = vlaneseq
    %v681 = vshrl.u32 %v680, 7
    %v682 = vsub.s32 %v679, %v681
    %v683 = vrot.slane %v669, %v682
    %v684 = vcombine.high %v676, %v676
    %v685 = vcombine.high %v683, %v683
    %v687 = vunpack.c.l.s4 1966171168
    %v688 = vunpack.c.0.s8 %v687
    %v689 = vlaneseq
    %v690 = vshrl.u32 %v689, 7
    %v691 = vsub.s32 %v688, %v690
    %v692 = vrot.slane %v676, %v691
    %v694 = vunpack.c.l.s4 1966171168
    %v695 = vunpack.c.0.s8 %v694
    %v696 = vlaneseq
    %v697 = vshrl.u32 %v696, 7
    %v698 = vsub.s32 %v695, %v697
    %v699 = vrot.slane %v683, %v698
    %v701 = vunpack.c.l.s4 1966171168
    %v702 = vunpack.c.0.s8 %v701
    %v703 = vlaneseq
    %v704 = vshrl.u32 %v703, 7
    %v705 = vsub.s32 %v702, %v704
    %v706 = vrot.slane %v684, %v705
    %v708 = vunpack.c.l.s4 1966171168
    %v709 = vunpack.c.0.s8 %v708
    %v710 = vlaneseq
    %v711 = vshrl.u32 %v710, 7
    %v712 = vsub.s32 %v709, %v711
    %v713 = vrot.slane %v685, %v712
    %v714 = vcombine.high %v692, %v692
    %v715 = vcombine.high %v699, %v699
    %v716 = vcombine.high %v706, %v706
    %v717 = vcombine.high %v713, %v713
    %v718 = vcombine.low %v643, %v657
    %v719 = vcombine.low %v665, %v667
    %v720 = vcombine.low %v650, %v664
    %v721 = vcombine.low %v666, %v668
    %v723 = vunpack.c.l.s4 1966171168
    %v724 = vunpack.c.0.s8 %v723
    %v725 = vlaneseq
    %v726 = vshrl.u32 %v725, 7
    %v727 = vsub.s32 %v724, %v726
    %v728 = vrot.slane %v718, %v727
    %v730 = vunpack.c.l.s4 1966171168
    %v731 = vunpack.c.0.s8 %v730
    %v732 = vlaneseq
    %v733 = vshrl.u32 %v732, 7
    %v734 = vsub.s32 %v731, %v733
    %v735 = vrot.slane %v719, %v734
    %v737 = vunpack.c.l.s4 1966171168
    %v738 = vunpack.c.0.s8 %v737
    %v739 = vlaneseq
    %v740 = vshrl.u32 %v739, 7
    %v741 = vsub.s32 %v738, %v740
    %v742 = vrot.slane %v720, %v741
    %v744 = vunpack.c.l.s4 1966171168
    %v745 = vunpack.c.0.s8 %v744
    %v746 = vlaneseq
    %v747 = vshrl.u32 %v746, 7
    %v748 = vsub.s32 %v745, %v747
    %v749 = vrot.slane %v721, %v748
    %v750 = vcombine.low %v728, %v735
    %v751 = vcombine.low %v742, %v749
    %v753 = vunpack.c.l.s4 1966171168
    %v754 = vunpack.c.0.s8 %v753
    %v755 = vlaneseq
    %v756 = vshrl.u32 %v755, 7
    %v757 = vsub.s32 %v754, %v756
    %v758 = vrot.slane %v750, %v757
    %v760 = vunpack.c.l.s4 1966171168
    %v761 = vunpack.c.0.s8 %v760
    %v762 = vlaneseq
    %v763 = vshrl.u32 %v762, 7
    %v764 = vsub.s32 %v761, %v763
    %v765 = vrot.slane %v751, %v764
    %v766 = vcombine.low %v758, %v765
    %v767 = vcombine.low %v692, %v706
    %v768 = vcombine.low %v714, %v716
    %v769 = vcombine.low %v699, %v713
    %v770 = vcombine.low %v715, %v717
    %v772 = vunpack.c.l.s4 1966171168
    %v773 = vunpack.c.0.s8 %v772
    %v774 = vlaneseq
    %v775 = vshrl.u32 %v774, 7
    %v776 = vsub.s32 %v773, %v775
    %v777 = vrot.slane %v767, %v776
    %v779 = vunpack.c.l.s4 1966171168
    %v780 = vunpack.c.0.s8 %v779
    %v781 = vlaneseq
    %v782 = vshrl.u32 %v781, 7
    %v783 = vsub.s32 %v780, %v782
    %v784 = vrot.slane %v768, %v783
    %v786 = vunpack.c.l.s4 1966171168
    %v787 = vunpack.c.0.s8 %v786
    %v788 = vlaneseq
    %v789 = vshrl.u32 %v788, 7
    %v790 = vsub.s32 %v787, %v789
    %v791 = vrot.slane %v769, %v790
    %v793 = vunpack.c.l.s4 1966171168
    %v794 = vunpack.c.0.s8 %v793
    %v795 = vlaneseq
    %v796 = vshrl.u32 %v795, 7
    %v797 = vsub.s32 %v794, %v796
    %v798 = vrot.slane %v770, %v797
    %v799 = vcombine.low %v777, %v784
    %v800 = vcombine.low %v791, %v798
    %v802 = vunpack.c.l.s4 1966171168
    %v803 = vunpack.c.0.s8 %v802
    %v804 = vlaneseq
    %v805 = vshrl.u32 %v804, 7
    %v806 = vsub.s32 %v803, %v805
    %v807 = vrot.slane %v799, %v806
    %v809 = vunpack.c.l.s4 1966171168
    %v810 = vunpack.c.0.s8 %v809
    %v811 = vlaneseq
    %v812 = vshrl.u32 %v811, 7
    %v813 = vsub.s32 %v810, %v812
    %v814 = vrot.slane %v800, %v813
    %v815 = vcombine.low %v807, %v814
    %816 = vset.pattern.permute.xlu0 0
    %817 = vperm.xlu0 %816, %v766
    %v818 = vpop.permute.xlu0 %817
    %819 = vset.pattern.permute.xlu0 0
    %820 = vperm.xlu0 %819, %v815
    %v821 = vpop.permute.xlu0 %820
    %v822 = vlaneseq
    %v823 = vshrl.u32 %v822, 7
    %v824 = vsub.s32 %v67, %v823
    %v825 = vrot.slane %v818, %v824
    %v826 = vlaneseq
    %v827 = vshrl.u32 %v826, 7
    %v828 = vsub.s32 %v67, %v827
    %v829 = vrot.slane %v821, %v828
    %v831 = vunpack.c.l.s4 1966171168
    %v832 = vunpack.c.0.s8 %v831
    %v833 = vlaneseq
    %v834 = vshrl.u32 %v833, 7
    %v835 = vsub.s32 %v832, %v834
    %v836 = vrot.slane %v825, %v835
    %v838 = vunpack.c.l.s4 1966171168
    %v839 = vunpack.c.0.s8 %v838
    %v840 = vlaneseq
    %v841 = vshrl.u32 %v840, 7
    %v842 = vsub.s32 %v839, %v841
    %v843 = vrot.slane %v836, %v842
    %v845 = vunpack.c.l.s4 1966171168
    %v846 = vunpack.c.0.s8 %v845
    %v847 = vlaneseq
    %v848 = vshrl.u32 %v847, 7
    %v849 = vsub.s32 %v846, %v848
    %v850 = vrot.slane %v829, %v849
    %v852 = vunpack.c.l.s4 1966171168
    %v853 = vunpack.c.0.s8 %v852
    %v854 = vlaneseq
    %v855 = vshrl.u32 %v854, 7
    %v856 = vsub.s32 %v853, %v855
    %v857 = vrot.slane %v850, %v856
    %v860 = vsub.f32 %v596, %v843
    %v861 = vsub.f32 %v597, %v857
    %v862 = vadd.f32 %v860, %v142
    %v863 = vadd.f32 %v861, %v143
    %v864 = vlaneseq
    %v865 = vshrl.u32 %v864, 7
    %v866 = vsub.s32 0, %v865
    %v867 = vrot.slane %v352, %v866
    %869 = vbcast.lane.b32.xlu0 %v867, 256
    %v870 = vpop.permute.xlu0 %869
    %v871 = vlaneseq
    %v872 = vshrl.u32 %v871, 7
    %v873 = vsub.s32 0, %v872
    %v874 = vrot.slane %v353, %v873
    %876 = vbcast.lane.b32.xlu0 %v874, 256
    %v877 = vpop.permute.xlu0 %876
    %v878 = vmul.f32 %v32, %v870
    %v879 = vmul.f32 %v33, %v870
    %v880 = vmul.f32 %v34, %v877
    %v881 = vmul.f32 %v35, %v877
    %v882 = vlaneseq
    %v883 = vshrl.u32 %v882, 7
    %v884 = vsub.s32 0, %v883
    %v885 = vrot.slane %v862, %v884
    %887 = vbcast.lane.b32.xlu0 %v885, 256
    %v888 = vpop.permute.xlu0 %887
    %v889 = vlaneseq
    %v890 = vshrl.u32 %v889, 7
    %v891 = vsub.s32 0, %v890
    %v892 = vrot.slane %v863, %v891
    %894 = vbcast.lane.b32.xlu0 %v892, 256
    %v895 = vpop.permute.xlu0 %894
    %v896 = vadd.f32 %v878, %v888
    %v897 = vadd.f32 %v879, %v888
    %v898 = vadd.f32 %v880, %v895
    %v899 = vadd.f32 %v881, %v895
    %900 = vst [vmem:[#allocation5] sm:$0xff] %v896
    %901 = vst [vmem:[#allocation5 + $0x8] sm:$0xff] %v897
    %902 = vst [vmem:[#allocation5 + $0x10] sm:$0xff] %v898
    %903 = vst [vmem:[#allocation5 + $0x18] sm:$0xff] %v899
    // Predicated region
    $region22: #{tpu_custom_call.1} parent=1 // pred_check
      _
    $region23: #{tpu_custom_call.1} parent=1 // pred_check_branch
      %905 = sbr.rel (0) target = $region25
    $region24: #{tpu_custom_call.1} parent=1 // pred_region
      %s907 = ssub.s32 512, 512
      %908 = vsyncadd [#allocation4], %s907
      %s909 = sshll.u32 [#allocation5], 4
      %s910 = int_to_ptr.vmem [resolvable:$true] %s909
      %915 = dma.vmem_to_hbm [thread:$0]  %s910, 512, %s4, [#allocation4], 256, 256, 16
    $region25: #{tpu_custom_call.1} parent=1 // pred_fallthru
      _
    // Predicated region
    $region26: #{tpu_custom_call.1} parent=1 // pred_check
      _
    $region27: #{tpu_custom_call.1} parent=1 // pred_check_branch
      %917 = sbr.rel (0) target = $region29
    $region28: #{tpu_custom_call.1} parent=1 // pred_region
      %918 = dma.done [#allocation4], 512
    $region29: #{tpu_custom_call.1} parent=1 // pred_fallthru
      _
    %919 = vsyncpa [#allocation3], 1
    %920 = vsyncpa [#allocation4], 1

</llo_original>
